<compile_context>
chip_gen: v6e
topology: v6e:2x2x1
jax: 0.10.0
libtpu: 0.0.40
codegen_flags: <defaults>
</compile_context>

<pallas_src>
import functools

import jax
import jax.numpy as jnp
from jax.experimental import pallas as pl
from jax.experimental.pallas import tpu as pltpu


def _yolo_train_loss_kernel(x_ref, w_ref, b_ref, t_ref, part_ref, *,
                            n_heads, c_out, tile_hw, chunk, lane_w,
                            needs_mask, valid_tail):
    """Grid = (batch, spatial_tile). One fused streaming pass over x / target.

    x_ref:    (1, Cin, tile_hw)       NCHW, spatial flattened onto lanes
    w_ref:    (n_heads*Cout, Cin)     resident (constant block index)
    b_ref:    (n_heads*Cout, 1)       resident
    t_ref:    (1, Cout, tile_hw)
    part_ref: (1, 1, 1, lane_w)       per-tile partial sum of squared error
    """
    w = w_ref[...]                       # (3*Cout, Cin), tiny & resident
    b = b_ref[...]                       # (3*Cout, 1)
    xv = x_ref.at[0]                     # (Cin, tile_hw) view, no load yet
    tv = t_ref.at[0]                     # (Cout, tile_hw) view

    def chunk_sq(start, mask_valid=None):
        """Bias-add + per-head squared error for one `chunk`-lane sub-chunk,
        folded to a (Cout, lane_w) vreg-resident partial (pure VPU adds)."""
        xs = xv[:, pl.ds(start, chunk)]                      # (Cin, chunk)
        ts = tv[:, pl.ds(start, chunk)]                      # (Cout, chunk)
        # One stacked MXU matmul for all heads: (3*Cout, Cin) @ (Cin, chunk).
        y = jnp.dot(w, xs, preferred_element_type=jnp.float32) + b
        sq = None
        for h in range(n_heads):                             # static unroll (3)
            d = y[h * c_out:(h + 1) * c_out] - ts
            sq = d * d if sq is None else sq + d * d
        if mask_valid is not None:                           # tail chunk only
            pos = start + jax.lax.broadcasted_iota(jnp.int32, sq.shape, 1)
            sq = jnp.where(pos < mask_valid, sq, 0.0)
        folded = sq[:, 0:lane_w]
        for k in range(1, chunk // lane_w):                  # tiny static unroll
            folded = folded + sq[:, k * lane_w:(k + 1) * lane_w]
        return folded                                        # (Cout, lane_w)

    def full_tile():
        acc = chunk_sq(0)
        n_chunks = tile_hw // chunk
        if n_chunks > 1:
            def body(ci, a):
                return a + chunk_sq(pl.multiple_of(ci * chunk, chunk))
            acc = jax.lax.fori_loop(1, n_chunks, body, acc)
        return acc

    def tail_tile():
        # Chunks entirely past `valid_tail` are statically skipped; only the
        # straddling chunk pays for the iota/compare/select mask.
        n_full = valid_tail // chunk
        rem = valid_tail - n_full * chunk
        acc = jnp.zeros((c_out, lane_w), jnp.float32)
        if n_full > 0:
            def body(ci, a):
                return a + chunk_sq(pl.multiple_of(ci * chunk, chunk))
            acc = jax.lax.fori_loop(0, n_full, body, acc)
        if rem > 0:
            acc = acc + chunk_sq(n_full * chunk, mask_valid=valid_tail)
        return acc

    if needs_mask:
        last = pl.num_programs(1) - 1

        @pl.when(pl.program_id(1) != last)
        def _():
            part_ref[0, 0] = jnp.sum(full_tile(), axis=0, keepdims=True)

        @pl.when(pl.program_id(1) == last)
        def _():
            part_ref[0, 0] = jnp.sum(tail_tile(), axis=0, keepdims=True)
    else:
        part_ref[0, 0] = jnp.sum(full_tile(), axis=0, keepdims=True)


def _pick_tile_hw(hw, max_tile):
    """Largest lane-dense spatial tile; prefer a divisor of hw (no tail)."""
    if hw <= 128:
        return hw
    cap = max(128, min(max_tile, (hw // 128) * 128))
    for cand in range(cap, 0, -128):   # largest multiple of 128 dividing hw
        if hw % cand == 0:
            return cand
    nt = -(-hw // cap)                 # no divisor: balance the tail tile
    bal = -(-hw // nt)
    return ((bal + 127) // 128) * 128


def _pick_chunk(tile_hw, max_chunk=256):
    """Sub-chunk of the tile processed per inner-loop step (vreg-resident)."""
    if tile_hw <= max_chunk:
        return tile_hw
    c = (max_chunk // 128) * 128
    while tile_hw % c != 0:
        c -= 128
    return c


def train_forward_loss(images_nchw, target_nchw, weights, biases, *,
                       max_tile_hw=32768):
    """images_nchw: (B, Cin, H, W), target_nchw: (B, Cout, H, W),
    weights: (3, Cin, Cout), biases: (3, Cout). Returns scalar total loss."""
    B, Cin, H, W = images_nchw.shape
    _, Cout, _, _ = target_nchw.shape
    n_heads = weights.shape[0]
    hw = H * W

    # NCHW consumed directly: channels are the contraction dim, spatial sits
    # on the 128-lane axis. These reshapes are free (no data movement).
    x = images_nchw.reshape(B, Cin, hw)
    t = target_nchw.reshape(B, Cout, hw)
    # Stack all heads into one (3*Cout, Cin) operand -> single MXU matmul.
    w_stk = jnp.swapaxes(weights, 1, 2).reshape(n_heads * Cout, Cin)
    b_stk = biases.reshape(n_heads * Cout, 1)

    tile_hw = _pick_tile_hw(hw, max_tile_hw)
    if B * (-(-hw // tile_hw)) < 2 and hw >= 256:
        # keep >= 2 grid steps so v7x's two TensorCores both get work
        tile_hw = _pick_tile_hw(hw, max(128, ((hw // 2) // 128) * 128))
    nt = pl.cdiv(hw, tile_hw)
    needs_mask = (hw % tile_hw) != 0
    valid_tail = hw - (nt - 1) * tile_hw
    chunk = _pick_chunk(tile_hw)
    lane_w = min(128, chunk)

    kernel = functools.partial(
        _yolo_train_loss_kernel,
        n_heads=n_heads, c_out=Cout, tile_hw=tile_hw, chunk=chunk,
        lane_w=lane_w, needs_mask=needs_mask, valid_tail=valid_tail)

    partials = pl.pallas_call(
        kernel,
        out_shape=jax.ShapeDtypeStruct((B, nt, 1, lane_w), jnp.float32),
        grid_spec=pltpu.PrefetchScalarGridSpec(
            num_scalar_prefetch=0,
            grid=(B, nt),
            in_specs=[
                pl.BlockSpec((1, Cin, tile_hw), lambda bi, ti: (bi, 0, ti)),
                pl.BlockSpec((n_heads * Cout, Cin), lambda bi, ti: (0, 0)),
                pl.BlockSpec((n_heads * Cout, 1), lambda bi, ti: (0, 0)),
                pl.BlockSpec((1, Cout, tile_hw), lambda bi, ti: (bi, 0, ti)),
            ],
            out_specs=pl.BlockSpec((1, 1, 1, lane_w),
                                   lambda bi, ti: (bi, ti, 0, 0)),
        ),
        compiler_params=pltpu.CompilerParams(
            dimension_semantics=("parallel", "parallel"),
            vmem_limit_bytes=32 * 1024 * 1024),
    )(x, w_stk, b_stk, t)

    inv_n = 1.0 / float(B * hw * Cout)           # MSE denominator per head
    return jnp.sum(partials) * inv_n


def _reference_loss(images_nchw, target_nchw, weights, biases):
    B, Cin, H, W = images_nchw.shape
    Cout = target_nchw.shape[1]
    x = jnp.transpose(images_nchw, (0, 2, 3, 1)).reshape(-1, Cin)
    t = jnp.transpose(target_nchw, (0, 2, 3, 1)).reshape(-1, Cout)
    total = 0.0
    for h in range(weights.shape[0]):
        out = x @ weights[h] + biases[h][None, :]
        total = total + jnp.mean((out - t) ** 2)
    return total


if __name__ == "__main__":
    key = jax.random.PRNGKey(0)
    k_img, k_tgt, k_w, k_b = jax.random.split(key, 4)

    B, Cin, H, W = 2, 4, 16, 16
    num_anchors, num_classes = 3, 3
    Cout = num_anchors * (5 + num_classes)  # 24, YOLO-head channel count

    images = jax.random.normal(k_img, (B, Cin, H, W), dtype=jnp.float32)
    target = jax.random.normal(k_tgt, (B, Cout, H, W), dtype=jnp.float32)

    # deterministic synthetic parameters for the 3 per-scale heads
    weights = 0.1 * jax.random.normal(k_w, (3, Cin, Cout), dtype=jnp.float32)
    biases = 0.1 * jax.random.normal(k_b, (3, Cout), dtype=jnp.float32)

    loss = train_forward_loss(images, target, weights, biases)
    loss = jax.block_until_ready(loss)

    ref = _reference_loss(images, target, weights, biases)
    assert jnp.allclose(loss, ref, rtol=1e-5, atol=1e-5), (loss, ref)

    print("KERNEL_OK")
</pallas_src>

<mosaic_0001>
module attributes {stable_mosaic.version = 11 : i64} {
  func.func @_yolo_train_loss_kernel(%arg0: i32, %arg1: i32, %arg2: memref<1x4x256xf32, #tpu.memory_space<vmem>>, %arg3: memref<72x4xf32, #tpu.memory_space<vmem>>, %arg4: memref<72x1xf32, #tpu.memory_space<vmem>>, %arg5: memref<1x24x256xf32, #tpu.memory_space<vmem>>, %arg6: memref<1x1x1x128xf32, #tpu.memory_space<vmem>>) attributes {dimension_semantics = [#tpu.dimension_semantics<parallel>, #tpu.dimension_semantics<parallel>], iteration_bounds = array<i64: 2, 1>, scalar_prefetch = 0 : i64, scratch_operands = 0 : i64, tpu.core_type = #tpu.core_type<tc>, window_params = [{transform_indices = @transform_0, window_bounds = array<i64: 1, 4, 256>}, {pipeline_mode = #tpu.pipeline_mode<synchronous>, transform_indices = @transform_1, window_bounds = array<i64: 72, 4>}, {pipeline_mode = #tpu.pipeline_mode<synchronous>, transform_indices = @transform_2, window_bounds = array<i64: 72, 1>}, {transform_indices = @transform_3, window_bounds = array<i64: 1, 24, 256>}, {transform_indices = @transform_4, window_bounds = array<i64: 1, 1, 1, 128>}]} {
    %c0 = arith.constant 0 : index
    %c0_0 = arith.constant 0 : index
    %0 = vector.load %arg3[%c0, %c0_0] : memref<72x4xf32, #tpu.memory_space<vmem>>, vector<72x4xf32>
    %c0_1 = arith.constant 0 : index
    %c0_2 = arith.constant 0 : index
    %1 = vector.load %arg4[%c0_1, %c0_2] : memref<72x1xf32, #tpu.memory_space<vmem>>, vector<72x1xf32>
    %c0_i32 = arith.constant 0 : i32
    %c0_i32_3 = arith.constant 0 : i32
    %c0_i32_4 = arith.constant 0 : i32
    %2 = tpu.memref_slice %arg2[%c0_i32, %c0_i32_3, %c0_i32_4] : memref<1x4x256xf32, #tpu.memory_space<vmem>> -> memref<1x4x256xf32, #tpu.memory_space<vmem>>
    %3 = tpu.memref_squeeze %2 : memref<1x4x256xf32, #tpu.memory_space<vmem>> -> memref<4x256xf32, #tpu.memory_space<vmem>>
    %c0_5 = arith.constant 0 : index
    %c0_6 = arith.constant 0 : index
    %4 = vector.load %3[%c0_5, %c0_6] : memref<4x256xf32, #tpu.memory_space<vmem>>, vector<4x256xf32>
    %c0_i32_7 = arith.constant 0 : i32
    %c0_i32_8 = arith.constant 0 : i32
    %c0_i32_9 = arith.constant 0 : i32
    %5 = tpu.memref_slice %arg5[%c0_i32_7, %c0_i32_8, %c0_i32_9] : memref<1x24x256xf32, #tpu.memory_space<vmem>> -> memref<1x24x256xf32, #tpu.memory_space<vmem>>
    %6 = tpu.memref_squeeze %5 : memref<1x24x256xf32, #tpu.memory_space<vmem>> -> memref<24x256xf32, #tpu.memory_space<vmem>>
    %c0_10 = arith.constant 0 : index
    %c0_11 = arith.constant 0 : index
    %7 = vector.load %6[%c0_10, %c0_11] : memref<24x256xf32, #tpu.memory_space<vmem>>, vector<24x256xf32>
    %cst = arith.constant dense<0.000000e+00> : vector<72x256xf32>
    %8 = tpu.matmul %0, %4, %cst {dimension_numbers = #tpu.dot_dimension_numbers<[1], [0], [0], [1], [0, 0, 1, 1], [], []>} : vector<72x4xf32>, vector<4x256xf32>, vector<72x256xf32> -> vector<72x256xf32>
    %9 = vector.broadcast %1 : vector<72x1xf32> to vector<72x256xf32>
    %10 = arith.addf %8, %9 : vector<72x256xf32>
    %11 = vector.extract_strided_slice %10 {offsets = [0, 0], sizes = [24, 256], strides = [1, 1]} : vector<72x256xf32> to vector<24x256xf32>
    %12 = arith.subf %11, %7 : vector<24x256xf32>
    %13 = arith.mulf %12, %12 : vector<24x256xf32>
    %14 = vector.extract_strided_slice %10 {offsets = [24, 0], sizes = [24, 256], strides = [1, 1]} : vector<72x256xf32> to vector<24x256xf32>
    %15 = arith.subf %14, %7 : vector<24x256xf32>
    %16 = arith.mulf %15, %15 : vector<24x256xf32>
    %17 = arith.addf %13, %16 : vector<24x256xf32>
    %18 = vector.extract_strided_slice %10 {offsets = [48, 0], sizes = [24, 256], strides = [1, 1]} : vector<72x256xf32> to vector<24x256xf32>
    %19 = arith.subf %18, %7 : vector<24x256xf32>
    %20 = arith.mulf %19, %19 : vector<24x256xf32>
    %21 = arith.addf %17, %20 : vector<24x256xf32>
    %22 = vector.extract_strided_slice %21 {offsets = [0, 0], sizes = [24, 128], strides = [1, 1]} : vector<24x256xf32> to vector<24x128xf32>
    %23 = vector.extract_strided_slice %21 {offsets = [0, 128], sizes = [24, 128], strides = [1, 1]} : vector<24x256xf32> to vector<24x128xf32>
    %24 = arith.addf %22, %23 : vector<24x128xf32>
    %cst_12 = arith.constant dense<0.000000e+00> : vector<128xf32>
    %25 = vector.multi_reduction <add>, %24, %cst_12 [0] : vector<24x128xf32> to vector<128xf32>
    %26 = vector.shape_cast %25 : vector<128xf32> to vector<1x128xf32>
    %c0_13 = arith.constant 0 : index
    %c0_14 = arith.constant 0 : index
    %c0_15 = arith.constant 0 : index
    %c0_16 = arith.constant 0 : index
    %27 = vector.load %arg6[%c0_13, %c0_14, %c0_15, %c0_16] : memref<1x1x1x128xf32, #tpu.memory_space<vmem>>, vector<1x1x1x128xf32>
    %28 = vector.shape_cast %27 : vector<1x1x1x128xf32> to vector<1x128xf32>
    %29 = vector.shape_cast %26 : vector<1x128xf32> to vector<1x1x1x128xf32>
    tpu.vector_store %arg6[%c0_13, %c0_14, %c0_15, %c0_16], %29 {strides = array<i32>} : memref<1x1x1x128xf32, #tpu.memory_space<vmem>>, vector<1x1x1x128xf32>,
    return
  }
  func.func @transform_0(%arg0: i32, %arg1: i32) -> (i32, i32, i32) {
    %c0_i32 = arith.constant 0 : i32
    %c0_i32_0 = arith.constant 0 : i32
    return %arg0, %c0_i32, %arg1 : i32, i32, i32
  }
  func.func @transform_1(%arg0: i32, %arg1: i32) -> (i32, i32) {
    %c0_i32 = arith.constant 0 : i32
    %c0_i32_0 = arith.constant 0 : i32
    %c0_i32_1 = arith.constant 0 : i32
    return %c0_i32, %c0_i32_0 : i32, i32
  }
  func.func @transform_2(%arg0: i32, %arg1: i32) -> (i32, i32) {
    %c0_i32 = arith.constant 0 : i32
    %c0_i32_0 = arith.constant 0 : i32
    %c0_i32_1 = arith.constant 0 : i32
    return %c0_i32, %c0_i32_0 : i32, i32
  }
  func.func @transform_3(%arg0: i32, %arg1: i32) -> (i32, i32, i32) {
    %c0_i32 = arith.constant 0 : i32
    %c0_i32_0 = arith.constant 0 : i32
    return %arg0, %c0_i32, %arg1 : i32, i32, i32
  }
  func.func @transform_4(%arg0: i32, %arg1: i32) -> (i32, i32, i32, i32) {
    %c0_i32 = arith.constant 0 : i32
    %c0_i32_0 = arith.constant 0 : i32
    %c0_i32_1 = arith.constant 0 : i32
    return %arg0, %arg1, %c0_i32, %c0_i32_0 : i32, i32, i32, i32
  }
}

</mosaic_0001>

<llo_original>
// kernel: tpu_custom_call.1
$region0: #{tpu_custom_call.1}
  #allocation0 [shape = 'u32[]', space=smem, size = 0x4, offset = 0x4, fixed_abs, tag = 'smem constant byte address 0x4 - core index']
  #allocation1 [shape = 'u32[144,128]{1,0:T(1,128)}', space=vmem, size = 0x12000, scoped, tag = 'internal scratch']
  %s0 = inlined_call_operand.vmem [shape: f32[2,4,256], index: 0, kind: input, shape index: {}]
  %s1 = inlined_call_operand.vmem [shape: f32[72,4], index: 1, kind: input, shape index: {}]
  %s2 = inlined_call_operand.vmem [shape: f32[72,1], index: 2, kind: input, shape index: {}]
  %s3 = inlined_call_operand.vmem [shape: f32[2,24,256], index: 3, kind: input, shape index: {}]
  %s4 = inlined_call_operand.hbm [shape: f32[2,1,1,128], index: 4, kind: output, shape index: {}]
  %s5 = sld [smem:[#allocation0]]
  $region49: #{tpu_custom_call.1} parent=0
    _
  %s7 = ssub.s32 1, %s5
  %s8 = scalar_select 0, %s7, %s5
  $region1: #{tpu_custom_call.1} parent=0
    #allocation2 [shape = 'u8[1024]{0}', space=vmem, size = 0x400, scoped, tag = 'output window, operand 0']
    #allocation3 [shape = 's32[2]{0}', space=sflag, size = 0x8, scoped, tag = 'scoped memory for tpu_custom_call.1']
    %9 = vsyncpa [#allocation3], 0
    %s10 = scalar_lea.sflag [#allocation3], 1
    %11 = vsyncpa %s10, 0
    loop: start=0, step=1, limit=4
    $region2: #{tpu_custom_call.1} parent=1 // loop_pre_header
      _
    $region3: #{tpu_custom_call.1} parent=1 // loop_header
      %s13 = sphi 0, %s17
      %p14 = scmp.ge.s32.totalorder %s13, 4
      %s20 = sphi 0, %s32
      %s21 = sphi 0, %s28
      %s22 = sphi 0, %s20
      %s23 = sphi 0, %s21
      %s24 = sphi 0, %s22
      %s25 = sphi 0, %s23
      %s37 = sphi 0, %s39
      %s40 = sphi 0, %s37
      %s41 = sphi 0, %s40
      %s57 = sphi 0, %s41
      %s61 = sphi 0, %s61
      %s63 = sphi 0, %s61
      %s64 = sphi 0, %s63
      %s78 = sphi 0, %s64
      %s82 = sphi 0, %s82
      %s84 = sphi 0, %s82
      %s85 = sphi 0, %s84
      %s99 = sphi 0, %s85
      %s107 = sphi 0, %s109
      %s110 = sphi 0, %s107
      %s111 = sphi 0, %s110
      %s127 = sphi 0, %s111
      %s135 = sphi 0, %s137
      %s138 = sphi 0, %s135
      %s139 = sphi 0, %s138
      %s155 = sphi 0, %s139
    $region4: #{tpu_custom_call.1} parent=1 // loop_header_branch
      %16 = sbr.rel (%p14) target = $region8
    $region5: #{tpu_custom_call.1} parent=1 // loop_body
      %s18 = ssub.s32 %s13, 1
      %s19 = ssub.s32 %s13, 2
      %s26 = sadd.s32 1, %s21
      %p27 = scmp.ge.s32.totalorder %s26, 1
      %s28 = scalar_select %p27, 0, %s26
      %s29 = sadd.s32 1, %s20
      %s30 = scalar_select %p27, %s29, %s20
      %p31 = scmp.ge.s32.totalorder %s30, 2
      %s32 = scalar_select %p31, 0, %s30
      %s33 = ssub.s32 %s20, %s32
      %s34 = ssub.s32 %s21, %s28
      %s35 = sor.u32 %s33, %s34
      %p36 = scmp.eq.s32.totalorder %s35, 0
      %s38 = sadd.s32 %s37, 1
      %s39 = scalar_select %p36, %s37, %s38
      %p42 = pneg %p36
      %p43 = scmp.eq.s32.totalorder %s13, 1
      %p44 = por %p42, %p43
      %p45 = scmp.ne.s32.totalorder %s37, %s40
      %p46 = scmp.eq.s32.totalorder %s13, 0
      %p47 = por %p45, %p46
      %p48 = scmp.ne.s32.totalorder %s37, %s40
      %p49 = scmp.eq.s32.totalorder %s18, 1
      %p50 = por %p48, %p49
      %p51 = scmp.ne.s32.totalorder %s40, %s41
      %p52 = scmp.eq.s32.totalorder %s18, 0
      %p53 = por %p51, %p52
      %p54 = scmp.ne.s32.totalorder %s40, %s41
      %p55 = scmp.eq.s32.totalorder %s19, 1
      %p56 = por %p54, %p55
      %p58 = scmp.ne.s32.totalorder %s41, %s57
      %p59 = scmp.eq.s32.totalorder %s19, 0
      %p60 = por %p58, %p59
      %s62 = sadd.s32 %s61, 1
      %p65 = scmp.eq.s32.totalorder %s13, 1
      %p66 = scmp.ne.s32.totalorder %s61, %s63
      %p67 = scmp.eq.s32.totalorder %s13, 0
      %p68 = por %p66, %p67
      %p69 = scmp.ne.s32.totalorder %s61, %s63
      %p70 = scmp.eq.s32.totalorder %s18, 1
      %p71 = por %p69, %p70
      %p72 = scmp.ne.s32.totalorder %s63, %s64
      %p73 = scmp.eq.s32.totalorder %s18, 0
      %p74 = por %p72, %p73
      %p75 = scmp.ne.s32.totalorder %s63, %s64
      %p76 = scmp.eq.s32.totalorder %s19, 1
      %p77 = por %p75, %p76
      %p79 = scmp.ne.s32.totalorder %s64, %s78
      %p80 = scmp.eq.s32.totalorder %s19, 0
      %p81 = por %p79, %p80
      %s83 = sadd.s32 %s82, 1
      %p86 = scmp.eq.s32.totalorder %s13, 1
      %p87 = scmp.ne.s32.totalorder %s82, %s84
      %p88 = scmp.eq.s32.totalorder %s13, 0
      %p89 = por %p87, %p88
      %p90 = scmp.ne.s32.totalorder %s82, %s84
      %p91 = scmp.eq.s32.totalorder %s18, 1
      %p92 = por %p90, %p91
      %p93 = scmp.ne.s32.totalorder %s84, %s85
      %p94 = scmp.eq.s32.totalorder %s18, 0
      %p95 = por %p93, %p94
      %p96 = scmp.ne.s32.totalorder %s84, %s85
      %p97 = scmp.eq.s32.totalorder %s19, 1
      %p98 = por %p96, %p97
      %p100 = scmp.ne.s32.totalorder %s85, %s99
      %p101 = scmp.eq.s32.totalorder %s19, 0
      %p102 = por %p100, %p101
      %s103 = ssub.s32 %s20, %s32
      %s104 = ssub.s32 %s21, %s28
      %s105 = sor.u32 %s103, %s104
      %p106 = scmp.eq.s32.totalorder %s105, 0
      %s108 = sadd.s32 %s107, 1
      %s109 = scalar_select %p106, %s107, %s108
      %p112 = pneg %p106
      %p113 = scmp.eq.s32.totalorder %s13, 1
      %p114 = por %p112, %p113
      %p115 = scmp.ne.s32.totalorder %s107, %s110
      %p116 = scmp.eq.s32.totalorder %s13, 0
      %p117 = por %p115, %p116
      %p118 = scmp.ne.s32.totalorder %s107, %s110
      %p119 = scmp.eq.s32.totalorder %s18, 1
      %p120 = por %p118, %p119
      %p121 = scmp.ne.s32.totalorder %s110, %s111
      %p122 = scmp.eq.s32.totalorder %s18, 0
      %p123 = por %p121, %p122
      %p124 = scmp.ne.s32.totalorder %s110, %s111
      %p125 = scmp.eq.s32.totalorder %s19, 1
      %p126 = por %p124, %p125
      %p128 = scmp.ne.s32.totalorder %s111, %s127
      %p129 = scmp.eq.s32.totalorder %s19, 0
      %p130 = por %p128, %p129
      %s131 = ssub.s32 %s20, %s32
      %s132 = ssub.s32 %s21, %s28
      %s133 = sor.u32 %s131, %s132
      %p134 = scmp.eq.s32.totalorder %s133, 0
      %s136 = sadd.s32 %s135, 1
      %s137 = scalar_select %p134, %s135, %s136
      %p140 = pneg %p134
      %p141 = scmp.eq.s32.totalorder %s13, 1
      %p142 = por %p140, %p141
      %p143 = scmp.ne.s32.totalorder %s135, %s138
      %p144 = scmp.eq.s32.totalorder %s13, 0
      %p145 = por %p143, %p144
      %p146 = scmp.ne.s32.totalorder %s135, %s138
      %p147 = scmp.eq.s32.totalorder %s18, 1
      %p148 = por %p146, %p147
      %p149 = scmp.ne.s32.totalorder %s138, %s139
      %p150 = scmp.eq.s32.totalorder %s18, 0
      %p151 = por %p149, %p150
      %p152 = scmp.ne.s32.totalorder %s138, %s139
      %p153 = scmp.eq.s32.totalorder %s19, 1
      %p154 = por %p152, %p153
      %p156 = scmp.ne.s32.totalorder %s139, %s155
      %p157 = scmp.eq.s32.totalorder %s19, 0
      %p158 = por %p156, %p157
      %p159 = scmp.le.s32.totalorder 1, %s13
      %p160 = scmp.lt.s32.totalorder %s13, 3
      %p161 = pnand %p159, %p160
      %p162 = pneg %p161
      // Predicated region
      $region9: #{tpu_custom_call.1} parent=5 // pred_check
        _
      $region10: #{tpu_custom_call.1} parent=5 // pred_check_branch
        %164 = sbr.rel (%p161) target = $region12
      $region11: #{tpu_custom_call.1} parent=5 // pred_region
        %s165 = ssub.s32 %s13, 1
        // Predicated region
        $region13: #{tpu_custom_call.1} parent=11 // pred_check
          %p166 = pneg %p74
        $region14: #{tpu_custom_call.1} parent=11 // pred_check_branch
          %168 = sbr.rel (%p166) target = $region16
        $region15: #{tpu_custom_call.1} parent=11 // pred_region
          _
        $region16: #{tpu_custom_call.1} parent=11 // pred_fallthru
          _
        // Predicated region
        $region17: #{tpu_custom_call.1} parent=11 // pred_check
          %p169 = pneg %p95
        $region18: #{tpu_custom_call.1} parent=11 // pred_check_branch
          %171 = sbr.rel (%p169) target = $region20
        $region19: #{tpu_custom_call.1} parent=11 // pred_region
          _
        $region20: #{tpu_custom_call.1} parent=11 // pred_fallthru
          _
      $region12: #{tpu_custom_call.1} parent=5 // pred_fallthru
        _
      %p172 = scmp.lt.s32.totalorder %s13, 2
      // Predicated region
      $region21: #{tpu_custom_call.1} parent=5 // pred_check
        %p173 = pneg %p172
      $region22: #{tpu_custom_call.1} parent=5 // pred_check_branch
        %175 = sbr.rel (%p173) target = $region24
      $region23: #{tpu_custom_call.1} parent=5 // pred_region
        // Predicated region
        $region25: #{tpu_custom_call.1} parent=23 // pred_check
          %p176 = pneg %p47
        $region26: #{tpu_custom_call.1} parent=23 // pred_check_branch
          %178 = sbr.rel (%p176) target = $region28
        $region27: #{tpu_custom_call.1} parent=23 // pred_region
          %s179 = smul.u32 2, %s21
          %p180 = scmp.lt.s32.totalorder %s20, 1
          %s181 = scalar_select %p180, %s20, 1
          %p182 = scmp.lt.s32.totalorder %s179, 1
          %s183 = scalar_select %p182, %s179, 1
          %s184 = smul.addr %s181, 2
          %s185 = sadd.s32 %s183, %s184
          %s186 = smul.addr %s185, 4
          %s187 = scalar_lea.vmem %s0, %s186
          %s188 = smul.u32 2, %s21
        $region28: #{tpu_custom_call.1} parent=23 // pred_fallthru
          _
        // Predicated region
        $region29: #{tpu_custom_call.1} parent=23 // pred_check
          %p189 = pneg %p117
        $region30: #{tpu_custom_call.1} parent=23 // pred_check_branch
          %191 = sbr.rel (%p189) target = $region32
        $region31: #{tpu_custom_call.1} parent=23 // pred_region
          %s192 = smul.u32 2, %s21
          %p193 = scmp.lt.s32.totalorder %s20, 1
          %s194 = scalar_select %p193, %s20, 1
          %p195 = scmp.lt.s32.totalorder %s192, 1
          %s196 = scalar_select %p195, %s192, 1
          %s197 = smul.addr %s194, 6
          %s198 = sadd.s32 %s196, %s197
          %s199 = smul.addr %s198, 8
          %s200 = scalar_lea.vmem %s3, %s199
          %s201 = smul.u32 2, %s21
        $region32: #{tpu_custom_call.1} parent=23 // pred_fallthru
          _
      $region24: #{tpu_custom_call.1} parent=5 // pred_fallthru
        _
      %p202 = scmp.le.s32.totalorder 1, %s13
      %p203 = scmp.lt.s32.totalorder %s13, 3
      %p204 = pnand %p202, %p203
      %p205 = pneg %p204
      // Predicated region
      $region33: #{tpu_custom_call.1} parent=5 // pred_check
        _
      $region34: #{tpu_custom_call.1} parent=5 // pred_check_branch
        %207 = sbr.rel (%p204) target = $region36
      $region35: #{tpu_custom_call.1} parent=5 // pred_region
        %s208 = ssub.s32 %s13, 1
        %s209 = smul.u32 2, %s23
        %p210 = scmp.lt.s32.totalorder %s22, 1
        %s211 = scalar_select %p210, %s22, 1
        %p212 = scmp.lt.s32.totalorder %s209, 1
        %s213 = scalar_select %p212, %s209, 1
        %s214 = smul.addr %s211, 2
        %s215 = sadd.s32 %s213, %s214
        %s216 = smul.addr %s215, 4
        %s217 = scalar_lea.vmem %s0, %s216
        %p218 = pneg %p53
        %p219 = pneg %p50
        %p220 = pneg %p74
        %p221 = pneg %p71
        %p222 = pneg %p95
        %p223 = pneg %p92
        %s224 = smul.u32 2, %s23
        %p225 = scmp.lt.s32.totalorder %s22, 1
        %s226 = scalar_select %p225, %s22, 1
        %p227 = scmp.lt.s32.totalorder %s224, 1
        %s228 = scalar_select %p227, %s224, 1
        %s229 = smul.addr %s226, 6
        %s230 = sadd.s32 %s228, %s229
        %s231 = smul.addr %s230, 8
        %s232 = scalar_lea.vmem %s3, %s231
        %p233 = pneg %p123
        %p234 = pneg %p120
        %p235 = pneg %p151
        %p236 = pneg %p148
        %s237 = sand.u32 %s138, 1
        %s238 = scalar_lea.sflag [#allocation3], %s237
        %s239 = sand.u32 %s138, 1
        %s240 = scalar_lea.vmem [#allocation2], %s239
        %s241 = smul.u32 2, %s23
        %p242 = scmp.lt.s32.totalorder %s22, 1
        %s243 = scalar_select %p242, %s22, 1
        %p244 = scmp.lt.s32.totalorder %s241, 1
        %s245 = scalar_select %p244, %s241, 1
        %s246 = smul.addr %s243, 2
        %s247 = sadd.s32 %s245, %s246
        %s248 = smul.addr %s247, 4
        %s249 = scalar_lea.vmem %s0, %s248
        %s250 = smul.u32 2, %s23
        %s251 = smul.u32 2, %s23
        %p252 = scmp.lt.s32.totalorder %s22, 1
        %s253 = scalar_select %p252, %s22, 1
        %p254 = scmp.lt.s32.totalorder %s251, 1
        %s255 = scalar_select %p254, %s251, 1
        %s256 = smul.addr %s253, 6
        %s257 = sadd.s32 %s255, %s256
        %s258 = smul.addr %s257, 8
        %s259 = scalar_lea.vmem %s3, %s258
        %s260 = smul.u32 2, %s23
        %v261 = vld [vmem:[%s1] sm:$0xff]
        %v262 = vld [vmem:[%s1 + $0x8] sm:$0xff]
        %v263 = vld [vmem:[%s1 + $0x10] sm:$0xff]
        %v264 = vld [vmem:[%s1 + $0x18] sm:$0xff]
        %v265 = vld [vmem:[%s1 + $0x20] sm:$0xff]
        %v266 = vld [vmem:[%s1 + $0x28] sm:$0xff]
        %v267 = vld [vmem:[%s1 + $0x30] sm:$0xff]
        %v268 = vld [vmem:[%s1 + $0x38] sm:$0xff]
        %v269 = vld [vmem:[%s1 + $0x40] sm:$0xff]
        %v270 = vld [vmem:[%s2] sm:$0xff]
        %v271 = vld [vmem:[%s2 + $0x8] sm:$0xff]
        %v272 = vld [vmem:[%s2 + $0x10] sm:$0xff]
        %v273 = vld [vmem:[%s2 + $0x18] sm:$0xff]
        %v274 = vld [vmem:[%s2 + $0x20] sm:$0xff]
        %v275 = vld [vmem:[%s2 + $0x28] sm:$0xff]
        %v276 = vld [vmem:[%s2 + $0x30] sm:$0xff]
        %v277 = vld [vmem:[%s2 + $0x38] sm:$0xff]
        %v278 = vld [vmem:[%s2 + $0x40] sm:$0xff]
        %v279 = vld [vmem:[%s249] sm:$0xff]
        %v280 = vld [vmem:[%s259] sm:$0xff]
        %v281 = vld [vmem:[%s259 + $0x8] sm:$0xff]
        %v282 = vld [vmem:[%s259 + $0x10] sm:$0xff]
        %v283 = vld [vmem:[%s259 + $0x18] sm:$0xff]
        %v284 = vld [vmem:[%s259 + $0x20] sm:$0xff]
        %v285 = vld [vmem:[%s259 + $0x28] sm:$0xff]
        %287 = vset.pattern.permute.xlu0 0
        %288 = vperm.xlu0 %287, %v270
        %v289 = vpop.permute.xlu0 %288
        %292 = vset.pattern.permute.xlu0 0
        %293 = vperm.xlu0 %292, %v271
        %v294 = vpop.permute.xlu0 %293
        %297 = vset.pattern.permute.xlu0 0
        %298 = vperm.xlu0 %297, %v272
        %v299 = vpop.permute.xlu0 %298
        %302 = vset.pattern.permute.xlu0 0
        %303 = vperm.xlu0 %302, %v273
        %v304 = vpop.permute.xlu0 %303
        %307 = vset.pattern.permute.xlu0 0
        %308 = vperm.xlu0 %307, %v274
        %v309 = vpop.permute.xlu0 %308
        %312 = vset.pattern.permute.xlu0 0
        %313 = vperm.xlu0 %312, %v275
        %v314 = vpop.permute.xlu0 %313
        %317 = vset.pattern.permute.xlu0 0
        %318 = vperm.xlu0 %317, %v276
        %v319 = vpop.permute.xlu0 %318
        %322 = vset.pattern.permute.xlu0 0
        %323 = vperm.xlu0 %322, %v277
        %v324 = vpop.permute.xlu0 %323
        %327 = vset.pattern.permute.xlu0 0
        %328 = vperm.xlu0 %327, %v278
        %v329 = vpop.permute.xlu0 %328
        %v332 = vcombine.high %v279, %v279
        %vm333 = vcmask 31744
        %v335 = vsel %vm333, %v261, 0
        %v338 = vsel %vm333, %v262, 0
        %v341 = vsel %vm333, %v263, 0
        %v344 = vsel %vm333, %v264, 0
        %v347 = vsel %vm333, %v265, 0
        %v350 = vsel %vm333, %v266, 0
        %v353 = vsel %vm333, %v267, 0
        %v356 = vsel %vm333, %v268, 0
        %v359 = vsel %vm333, %v269, 0
        %vm361 = vcmask 1043456
        %v362 = vsel %vm361, %v279, 0
        %v364 = vsel %vm361, %v332, 0
        %366 = vmatprep.subr.mxu0 0.0
        %367 = vmatpush1.msra.mxu0 0.0
        %368 = vmatprep.subr.mxu0 0.0
        %369 = vmatpush1.msra.mxu0 0.0
        %370 = vmatprep.subr.mxu0 0.0
        %371 = vmatpush1.msra.mxu0 0.0
        %372 = vmatprep.subr.mxu0 0.0
        %373 = vmatpush1.msra.mxu0 0.0
        %374 = vmatprep.subr.mxu0 0.0
        %375 = vmatpush1.msra.mxu0 0.0
        %376 = vmatprep.subr.mxu0 0.0
        %377 = vmatpush1.msra.mxu0 0.0
        %378 = vmatprep.subr.mxu0 0.0
        %379 = vmatpush1.msra.mxu0 0.0
        %380 = vmatprep.subr.mxu0 0.0
        %381 = vmatpush1.msra.mxu0 0.0
        %382 = vmatprep.subr.mxu0 0.0
        %383 = vmatpush1.msra.mxu0 0.0
        %384 = vmatprep.subr.mxu0 0.0
        %385 = vmatpush1.msra.mxu0 0.0
        %386 = vmatprep.subr.mxu0 0.0
        %387 = vmatpush1.msra.mxu0 0.0
        %388 = vmatprep.subr.mxu0 0.0
        %389 = vmatpush1.msra.mxu0 0.0
        %390 = vmatprep.subr.mxu0 0.0
        %391 = vmatpush1.msra.mxu0 0.0
        %392 = vmatprep.subr.mxu0 0.0
        %393 = vmatpush1.msra.mxu0 0.0
        %394 = vmatprep.subr.mxu0 0.0
        %395 = vmatpush1.msra.mxu0 0.0
        %396 = vmatprep.subr.mxu0 %v364
        %397 = vmatpush1.msra.mxu0 %v362
        %398 = vmatprep.subr.mxu0 0.0
        %399 = vmatpush2.msra.mxu0 0.0
        %400 = vmatprep.subr.mxu0 0.0
        %401 = vmatpush2.msra.mxu0 0.0
        %402 = vmatprep.subr.mxu0 0.0
        %403 = vmatpush2.msra.mxu0 0.0
        %404 = vmatprep.subr.mxu0 0.0
        %405 = vmatpush2.msra.mxu0 0.0
        %406 = vmatprep.subr.mxu0 0.0
        %407 = vmatpush2.msra.mxu0 0.0
        %408 = vmatprep.subr.mxu0 0.0
        %409 = vmatpush2.msra.mxu0 0.0
        %410 = vmatprep.subr.mxu0 0.0
        %411 = vmatpush2.msra.mxu0 0.0
        %412 = vmatprep.subr.mxu0 0.0
        %413 = vmatpush2.msra.mxu0 0.0
        %414 = vmatprep.subr.mxu0 0.0
        %415 = vmatpush2.msra.mxu0 0.0
        %416 = vmatprep.subr.mxu0 0.0
        %417 = vmatpush2.msra.mxu0 0.0
        %418 = vmatprep.subr.mxu0 0.0
        %419 = vmatpush2.msra.mxu0 0.0
        %420 = vmatprep.subr.mxu0 0.0
        %421 = vmatpush2.msra.mxu0 0.0
        %422 = vmatprep.subr.mxu0 0.0
        %423 = vmatpush2.msra.mxu0 0.0
        %424 = vmatprep.subr.mxu0 0.0
        %425 = vmatpush2.msra.mxu0 0.0
        %426 = vmatprep.subr.mxu0 0.0
        %427 = vmatpush2.msra.mxu0 0.0
        %428 = vmatprep.subr.mxu0 0.0
        %429 = vmatpush2.msra.mxu0 0.0
        %430 = vmatprep.mubr.f32.mxu0 0.0
        %431 = vmatmul.mubr.f32.gmra.mxu0 %v335
        %v432 = vpop.f32.mrf.mxu0
        %v433 = vadd.f32 %v289, %v432
        %v434 = vpop.f32.mrf.mxu0
        %v435 = vadd.f32 %v289, %v434
        %436 = vmatprep.mubr.f32.mxu0 0.0
        %437 = vmatmul.mubr.f32.gmra.mxu0 %v338
        %v438 = vpop.f32.mrf.mxu0
        %v439 = vadd.f32 %v294, %v438
        %v440 = vpop.f32.mrf.mxu0
        %v441 = vadd.f32 %v294, %v440
        %442 = vmatprep.mubr.f32.mxu0 0.0
        %443 = vmatmul.mubr.f32.gmra.mxu0 %v341
        %v444 = vpop.f32.mrf.mxu0
        %v445 = vadd.f32 %v299, %v444
        %v446 = vpop.f32.mrf.mxu0
        %v447 = vadd.f32 %v299, %v446
        %448 = vmatprep.mubr.f32.mxu0 0.0
        %449 = vmatmul.mubr.f32.gmra.mxu0 %v344
        %v450 = vpop.f32.mrf.mxu0
        %v451 = vadd.f32 %v304, %v450
        %v452 = vpop.f32.mrf.mxu0
        %v453 = vadd.f32 %v304, %v452
        %454 = vmatprep.mubr.f32.mxu0 0.0
        %455 = vmatmul.mubr.f32.gmra.mxu0 %v347
        %v456 = vpop.f32.mrf.mxu0
        %v457 = vadd.f32 %v309, %v456
        %v458 = vpop.f32.mrf.mxu0
        %v459 = vadd.f32 %v309, %v458
        %460 = vmatprep.mubr.f32.mxu0 0.0
        %461 = vmatmul.mubr.f32.gmra.mxu0 %v350
        %v462 = vpop.f32.mrf.mxu0
        %v463 = vadd.f32 %v314, %v462
        %v464 = vpop.f32.mrf.mxu0
        %v465 = vadd.f32 %v314, %v464
        %466 = vmatprep.mubr.f32.mxu0 0.0
        %467 = vmatmul.mubr.f32.gmra.mxu0 %v353
        %v468 = vpop.f32.mrf.mxu0
        %v469 = vadd.f32 %v319, %v468
        %v470 = vpop.f32.mrf.mxu0
        %v471 = vadd.f32 %v319, %v470
        %472 = vmatprep.mubr.f32.mxu0 0.0
        %473 = vmatmul.mubr.f32.gmra.mxu0 %v356
        %v474 = vpop.f32.mrf.mxu0
        %v475 = vadd.f32 %v324, %v474
        %v476 = vpop.f32.mrf.mxu0
        %v477 = vadd.f32 %v324, %v476
        %478 = vmatprep.mubr.f32.mxu0 0.0
        %479 = vmatmul.mubr.f32.gmra.mxu0 %v359
        %v480 = vpop.f32.mrf.mxu0
        %v481 = vadd.f32 %v329, %v480
        %v482 = vpop.f32.mrf.mxu0
        %v483 = vadd.f32 %v329, %v482
        %484 = vdwg.mxu0
        %v485 = vsub.f32 %v433, %v280
        %v486 = vsub.f32 %v435, %v281
        %v487 = vsub.f32 %v439, %v282
        %v488 = vsub.f32 %v441, %v283
        %v489 = vsub.f32 %v445, %v284
        %v490 = vsub.f32 %v447, %v285
        %v491 = vmul.f32 %v485, %v485
        %v492 = vmul.f32 %v486, %v486
        %v493 = vmul.f32 %v487, %v487
        %v494 = vmul.f32 %v488, %v488
        %v495 = vmul.f32 %v489, %v489
        %v496 = vmul.f32 %v490, %v490
        %v497 = vsub.f32 %v451, %v280
        %v498 = vsub.f32 %v453, %v281
        %v499 = vsub.f32 %v457, %v282
        %v500 = vsub.f32 %v459, %v283
        %v501 = vsub.f32 %v463, %v284
        %v502 = vsub.f32 %v465, %v285
        %v503 = vmul.f32 %v497, %v497
        %v504 = vmul.f32 %v498, %v498
        %v505 = vmul.f32 %v499, %v499
        %v506 = vmul.f32 %v500, %v500
        %v507 = vmul.f32 %v501, %v501
        %v508 = vmul.f32 %v502, %v502
        %v509 = vadd.f32 %v491, %v503
        %v510 = vadd.f32 %v492, %v504
        %v511 = vadd.f32 %v493, %v505
        %v512 = vadd.f32 %v494, %v506
        %v513 = vadd.f32 %v495, %v507
        %v514 = vadd.f32 %v496, %v508
        %v515 = vsub.f32 %v469, %v280
        %v516 = vsub.f32 %v471, %v281
        %v517 = vsub.f32 %v475, %v282
        %v518 = vsub.f32 %v477, %v283
        %v519 = vsub.f32 %v481, %v284
        %v520 = vsub.f32 %v483, %v285
        %v521 = vmul.f32 %v515, %v515
        %v522 = vmul.f32 %v516, %v516
        %v523 = vmul.f32 %v517, %v517
        %v524 = vmul.f32 %v518, %v518
        %v525 = vmul.f32 %v519, %v519
        %v526 = vmul.f32 %v520, %v520
        %v527 = vadd.f32 %v509, %v521
        %v528 = vadd.f32 %v510, %v522
        %v529 = vadd.f32 %v511, %v523
        %v530 = vadd.f32 %v512, %v524
        %v531 = vadd.f32 %v513, %v525
        %v532 = vadd.f32 %v514, %v526
        %v533 = vadd.f32 %v527, %v528
        %v534 = vadd.f32 %v529, %v530
        %v535 = vadd.f32 %v531, %v532
        %v536 = vadd.f32 %v533, %v534
        %v537 = vadd.f32 %v536, %v535
        %v538 = vrot.slane %v537, 4
        %v539 = vadd.f32 %v537, %v538
        %v540 = vrot.slane %v539, 2
        %v541 = vadd.f32 %v539, %v540
        %v542 = vrot.slane %v541, 1
        %v543 = vadd.f32 %v541, %v542
        %544 = vst [vmem:[%s240] sm:$0x1] %v543
        %s545 = sand.u32 %s138, 1
        %s546 = scalar_lea.sflag [#allocation3], %s545
        %s547 = sand.u32 %s138, 1
        %s548 = scalar_lea.vmem [#allocation2], %s547
        // Predicated region
        $region37: #{tpu_custom_call.1} parent=35 // pred_check
          %p549 = pneg %p148
        $region38: #{tpu_custom_call.1} parent=35 // pred_check_branch
          %551 = sbr.rel (%p549) target = $region40
        $region39: #{tpu_custom_call.1} parent=35 // pred_region
          %s553 = ssub.s32 16, 16
          %554 = vsyncadd %s546, %s553
          %s555 = sadd.s32 %s23, %s22
          %s556 = smul.addr %s555, 16
          %s557 = scalar_lea.hbm %s4, %s556
          %s559 = sshll.u32 %s548, 4
          %s560 = int_to_ptr.vmem [resolvable:$true] %s559
          %562 = dma.vmem_to_hbm [thread:$0]  %s560, 16, %s557, %s546
        $region40: #{tpu_custom_call.1} parent=35 // pred_fallthru
          _
      $region36: #{tpu_custom_call.1} parent=5 // pred_fallthru
        _
      %p563 = scmp.le.s32.totalorder 2, %s13
      // Predicated region
      $region41: #{tpu_custom_call.1} parent=5 // pred_check
        %p564 = pneg %p563
      $region42: #{tpu_custom_call.1} parent=5 // pred_check_branch
        %566 = sbr.rel (%p564) target = $region44
      $region43: #{tpu_custom_call.1} parent=5 // pred_region
        %s567 = ssub.s32 %s13, 2
        // Predicated region
        $region45: #{tpu_custom_call.1} parent=43 // pred_check
          %p568 = pneg %p154
        $region46: #{tpu_custom_call.1} parent=43 // pred_check_branch
          %570 = sbr.rel (%p568) target = $region48
        $region47: #{tpu_custom_call.1} parent=43 // pred_region
          %s571 = sand.u32 %s139, 1
          %s572 = scalar_lea.sflag [#allocation3], %s571
          %s573 = sand.u32 %s139, 1
          %s574 = scalar_lea.vmem [#allocation2], %s573
          %575 = dma.done %s572, 16
        $region48: #{tpu_custom_call.1} parent=43 // pred_fallthru
          _
      $region44: #{tpu_custom_call.1} parent=5 // pred_fallthru
        _
    $region6: #{tpu_custom_call.1} parent=1 // loop_footer
      %s17 = sadd.s32 1, %s13
    $region7: #{tpu_custom_call.1} parent=1 // loop_footer_branch
      %12 = sbr.rel target = $region3
    $region8: #{tpu_custom_call.1} parent=1 // loop_exit
      _
    %576 = vsyncpa [#allocation3], 1
    %s577 = scalar_lea.sflag [#allocation3], 1
    %578 = vsyncpa %s577, 1

</llo_original>
